<compile_context>
chip_gen: v7x
topology: tpu7x:2x2x1
jax: 0.10.0
libtpu: 0.0.40
codegen_flags: <defaults>
</compile_context>

<pallas_src>
import jax
import jax.numpy as jnp
from jax.experimental import pallas as pl
from jax.experimental.pallas import tpu as pltpu


def _d2_kernel(x_ref, y_ref, c_ref, o_ref):
    """x_ref, y_ref, o_ref: (Bt, Gt); c_ref: (4, Gt) f32 coefficients.

    c_ref rows:  0:  PP/2   (u = X+Y >= 0)
                 1: -NN/2   (u <  0)
                 2:  PN/2   (v = X-Y >= 0)
                 3: -NP/2   (v <  0)
    out = max(0, cu*u + cv*v)  ==  original nested-where formula.
    """
    x = x_ref[...].astype(jnp.float32)
    y = y_ref[...].astype(jnp.float32)
    u = x + y                      # u >= 0  <=>  Y >= -X
    v = x - y                      # v >= 0  <=>  Y <=  X
    cu = jnp.where(u >= 0.0, c_ref[0:1, :], c_ref[1:2, :])
    cv = jnp.where(v >= 0.0, c_ref[2:3, :], c_ref[3:4, :])
    o_ref[...] = jnp.maximum(cu * u + cv * v, 0.0).astype(o_ref.dtype)


def _sublane_align(dtype) -> int:
    # 8 for f32, 16 for bf16, 32 for int8/fp8 (packed-dtype sublane rules).
    return max(8, 32 // jnp.dtype(dtype).itemsize)


def _choose_tile(dim: int, max_tile: int, align: int) -> int:
    """Largest tile <= max_tile that is the full dim or an aligned divisor;
    otherwise an aligned tile with a ragged tail (safe: elementwise op)."""
    if dim <= max_tile:
        return dim
    t = (max_tile // align) * align
    while t >= align:
        if dim % t == 0:
            return t
        t -= align
    return (max_tile // align) * align


def clamped_d2_activation(inp: jax.Array, params: jax.Array,
                          *, bt_max: int = 512, gt_max: int = 2048) -> jax.Array:
    """ClampedD2Activation forward.
    inp: [B, ...] with prod(features) == 2*G; params: [G, 4] = (PP, NP, NN, PN)."""
    b_dim = inp.shape[0]
    g = params.shape[0]
    feat = 1
    for d in inp.shape[1:]:
        feat *= d
    assert feat == 2 * g, "input features must equal 2 * input_groups"

    # --- wrapper glue: de-interleave X/Y (producers may be fused into the
    # pallas input DMA via allow_input_fusion) and pack coefficients (f32). ---
    v3 = inp.reshape(b_dim, g, 2)
    X = v3[:, :, 0]                      # [B, G]
    Y = v3[:, :, 1]                      # [B, G]

    p32 = params.astype(jnp.float32)
    PP, NP, NN, PN = p32[:, 0], p32[:, 1], p32[:, 2], p32[:, 3]
    C = jnp.stack([0.5 * PP, -0.5 * NN, 0.5 * PN, -0.5 * NP], axis=0)  # [4, G] f32

    # --- tiling (dtype-aware sublane alignment, lane-dense gt) ---
    bt = _choose_tile(b_dim, bt_max, _sublane_align(inp.dtype))
    gt = _choose_tile(g, gt_max, 128)
    # Grid: G-tiles slow, B-tiles fast -> coefficient block constant across
    # consecutive steps (no re-DMA of C).
    grid = (pl.cdiv(g, gt), pl.cdiv(b_dim, bt))

    return pl.pallas_call(
        _d2_kernel,
        out_shape=jax.ShapeDtypeStruct((b_dim, g), inp.dtype),
        grid=grid,
        in_specs=[
            pl.BlockSpec((bt, gt), lambda j, i: (i, j)),   # X
            pl.BlockSpec((bt, gt), lambda j, i: (i, j)),   # Y
            pl.BlockSpec((4, gt), lambda j, i: (0, j)),    # packed coefficients
        ],
        out_specs=pl.BlockSpec((bt, gt), lambda j, i: (i, j)),
        compiler_params=pltpu.CompilerParams(
            dimension_semantics=("parallel", "parallel"),
            vmem_limit_bytes=40 * 1024 * 1024,
            allow_input_fusion=[True, True, False],
        ),
    )(X, Y, C)


def _reference(inp, params):
    b_dim = inp.shape[0]
    g = params.shape[0]
    v = inp.reshape(b_dim, g, 2)
    X = v[:, :, 0]
    Y = v[:, :, 1]
    PP = params[:, 0][None, :]
    NP = params[:, 1][None, :]
    NN = params[:, 2][None, :]
    PN = params[:, 3][None, :]
    out = jnp.where(
        Y <= X,
        jnp.where(Y >= -X, (PP + PN) / 2 * X + (PP - PN) / 2 * Y,
                  (PN - NN) / 2 * X - (PN + NN) / 2 * Y),
        jnp.where(Y >= -X, (PP - NP) / 2 * X + (PP + NP) / 2 * Y,
                  -(NP + NN) / 2 * X + (NP - NN) / 2 * Y))
    return jnp.maximum(out, 0.0)


if __name__ == "__main__":
    key = jax.random.PRNGKey(0)
    k1, k2, k3, k4 = jax.random.split(key, 4)

    # Small demo consistent with the module: batch=2, input_groups=128.
    B, G = 2, 128
    inp = jax.random.normal(k1, (B, 2 * G), dtype=jnp.float32)
    # Matches torch init: randint(0, 2) * 2 - 1 -> values in {-1, +1}, float32.
    params = (jax.random.randint(k2, (G, 4), 0, 2) * 2 - 1).astype(jnp.float32)

    out = clamped_d2_activation(inp, params)
    jax.block_until_ready(out)
    ref = _reference(inp, params)
    assert out.shape == (B, G)
    assert jnp.allclose(out, ref, atol=1e-5, rtol=1e-5), "mismatch vs reference"

    # Secondary check: ragged B/G tails and a multi-block grid.
    B2, G2 = 300, 257
    inp2 = jax.random.normal(k3, (B2, 2 * G2), dtype=jnp.float32)
    params2 = (jax.random.randint(k4, (G2, 4), 0, 2) * 2 - 1).astype(jnp.float32)
    out2 = clamped_d2_activation(inp2, params2, bt_max=128, gt_max=128)
    jax.block_until_ready(out2)
    ref2 = _reference(inp2, params2)
    assert out2.shape == (B2, G2)
    assert jnp.allclose(out2, ref2, atol=1e-5, rtol=1e-5), "mismatch vs reference (ragged)"

    # TODO(synk): project()/penalty() are training-time parameter ops (clamp of
    # params), not part of the forward pass; not implemented as a kernel.
    print("KERNEL_OK")
</pallas_src>

<mosaic_0001>
module attributes {stable_mosaic.version = 11 : i64} {
  func.func @_d2_kernel(%arg0: i32, %arg1: i32, %arg2: memref<2x128xf32, #tpu.memory_space<vmem>>, %arg3: memref<2x128xf32, #tpu.memory_space<vmem>>, %arg4: memref<4x128xf32, #tpu.memory_space<vmem>>, %arg5: memref<2x128xf32, #tpu.memory_space<vmem>>) attributes {dimension_semantics = [#tpu.dimension_semantics<parallel>, #tpu.dimension_semantics<parallel>], iteration_bounds = array<i64: 1, 1>, scalar_prefetch = 0 : i64, scratch_operands = 0 : i64, tpu.core_type = #tpu.core_type<tc>, window_params = [{transform_indices = @transform_0, window_bounds = array<i64: 2, 128>}, {transform_indices = @transform_1, window_bounds = array<i64: 2, 128>}, {transform_indices = @transform_2, window_bounds = array<i64: 4, 128>}, {transform_indices = @transform_3, window_bounds = array<i64: 2, 128>}]} {
    %c0 = arith.constant 0 : index
    %c0_0 = arith.constant 0 : index
    %0 = vector.load %arg2[%c0, %c0_0] : memref<2x128xf32, #tpu.memory_space<vmem>>, vector<2x128xf32>
    %c0_1 = arith.constant 0 : index
    %c0_2 = arith.constant 0 : index
    %1 = vector.load %arg3[%c0_1, %c0_2] : memref<2x128xf32, #tpu.memory_space<vmem>>, vector<2x128xf32>
    %2 = arith.addf %0, %1 : vector<2x128xf32>
    %3 = arith.subf %0, %1 : vector<2x128xf32>
    %cst = arith.constant 0.000000e+00 : f32
    %4 = vector.broadcast %cst : f32 to vector<2x128xf32>
    %5 = arith.cmpf oge, %2, %4 : vector<2x128xf32>
    %c0_3 = arith.constant 0 : index
    %c0_4 = arith.constant 0 : index
    %6 = vector.load %arg4[%c0_3, %c0_4] : memref<4x128xf32, #tpu.memory_space<vmem>>, vector<1x128xf32>
    %c1 = arith.constant 1 : index
    %c0_5 = arith.constant 0 : index
    %7 = vector.load %arg4[%c1, %c0_5] : memref<4x128xf32, #tpu.memory_space<vmem>>, vector<1x128xf32>
    %8 = vector.shape_cast %6 : vector<1x128xf32> to vector<1x128xf32>
    %9 = vector.broadcast %8 : vector<1x128xf32> to vector<2x128xf32>
    %10 = vector.shape_cast %7 : vector<1x128xf32> to vector<1x128xf32>
    %11 = vector.broadcast %10 : vector<1x128xf32> to vector<2x128xf32>
    %12 = arith.select %5, %9, %11 : vector<2x128xi1>, vector<2x128xf32>
    %cst_6 = arith.constant 0.000000e+00 : f32
    %13 = vector.broadcast %cst_6 : f32 to vector<2x128xf32>
    %14 = arith.cmpf oge, %3, %13 : vector<2x128xf32>
    %c2 = arith.constant 2 : index
    %c0_7 = arith.constant 0 : index
    %15 = vector.load %arg4[%c2, %c0_7] : memref<4x128xf32, #tpu.memory_space<vmem>>, vector<1x128xf32>
    %c3 = arith.constant 3 : index
    %c0_8 = arith.constant 0 : index
    %16 = vector.load %arg4[%c3, %c0_8] : memref<4x128xf32, #tpu.memory_space<vmem>>, vector<1x128xf32>
    %17 = vector.shape_cast %15 : vector<1x128xf32> to vector<1x128xf32>
    %18 = vector.broadcast %17 : vector<1x128xf32> to vector<2x128xf32>
    %19 = vector.shape_cast %16 : vector<1x128xf32> to vector<1x128xf32>
    %20 = vector.broadcast %19 : vector<1x128xf32> to vector<2x128xf32>
    %21 = arith.select %14, %18, %20 : vector<2x128xi1>, vector<2x128xf32>
    %22 = arith.mulf %12, %2 : vector<2x128xf32>
    %23 = arith.mulf %21, %3 : vector<2x128xf32>
    %24 = arith.addf %22, %23 : vector<2x128xf32>
    %cst_9 = arith.constant 0.000000e+00 : f32
    %25 = vector.broadcast %cst_9 : f32 to vector<2x128xf32>
    %26 = arith.maximumf %24, %25 : vector<2x128xf32>
    %c0_10 = arith.constant 0 : index
    %c0_11 = arith.constant 0 : index
    %27 = vector.load %arg5[%c0_10, %c0_11] : memref<2x128xf32, #tpu.memory_space<vmem>>, vector<2x128xf32>
    tpu.vector_store %arg5[%c0_10, %c0_11], %26 {strides = array<i32>} : memref<2x128xf32, #tpu.memory_space<vmem>>, vector<2x128xf32>,
    return
  }
  func.func @transform_0(%arg0: i32, %arg1: i32) -> (i32, i32) {
    %c0_i32 = arith.constant 0 : i32
    return %arg1, %arg0 : i32, i32
  }
  func.func @transform_1(%arg0: i32, %arg1: i32) -> (i32, i32) {
    %c0_i32 = arith.constant 0 : i32
    return %arg1, %arg0 : i32, i32
  }
  func.func @transform_2(%arg0: i32, %arg1: i32) -> (i32, i32) {
    %c0_i32 = arith.constant 0 : i32
    %c0_i32_0 = arith.constant 0 : i32
    return %c0_i32, %arg0 : i32, i32
  }
  func.func @transform_3(%arg0: i32, %arg1: i32) -> (i32, i32) {
    %c0_i32 = arith.constant 0 : i32
    return %arg1, %arg0 : i32, i32
  }
}

</mosaic_0001>

<llo_original>
// kernel: tpu_custom_call.1
$region0: #{tpu_custom_call.1}
  #allocation0 [shape = 'u32[]', space=smem, size = 0x4, offset = 0x4, fixed_abs, tag = 'smem constant byte address 0x4 - core index']
  #allocation1 [shape = 'u32[144,128]{1,0:T(1,128)}', space=vmem, size = 0x12000, scoped, tag = 'internal scratch']
  %s0 = inlined_call_operand.hbm [shape: f32[2,128], index: 0, kind: input, shape index: {}]
  %s1 = inlined_call_operand.vmem [shape: f32[2,128], index: 1, kind: input, shape index: {}]
  %s2 = inlined_call_operand.vmem [shape: f32[4,128], index: 2, kind: input, shape index: {}]
  %s3 = inlined_call_operand.hbm [shape: f32[2,128], index: 3, kind: output, shape index: {}]
  %s4 = sld [smem:[#allocation0]]
  $region26: #{tpu_custom_call.1} parent=0
    _
  %s6 = ssub.s32 1, %s4
  %s7 = scalar_select 0, %s6, %s4
  $region1: #{tpu_custom_call.1} parent=0
    #allocation2 [shape = 'u8[1024]{0}', space=vmem, size = 0x400, scoped, tag = 'input window, operand 0, single buffered']
    #allocation3 [shape = 's32[1]{0}', space=sflag, size = 0x4, scoped, tag = 'scoped memory for tpu_custom_call.1']
    #allocation4 [shape = 's32[1]{0}', space=sflag, size = 0x4, scoped, tag = 'scoped memory for tpu_custom_call.1']
    #allocation5 [shape = 'u8[1024]{0}', space=vmem, size = 0x400, scoped, tag = 'output window, operand 0, single buffered']
    %8 = vsyncpa [#allocation3], 0
    %9 = vsyncpa [#allocation4], 0
    // Predicated region
    $region2: #{tpu_custom_call.1} parent=1 // pred_check
      _
    $region3: #{tpu_custom_call.1} parent=1 // pred_check_branch
      %11 = sbr.rel (0) target = $region5
    $region4: #{tpu_custom_call.1} parent=1 // pred_region
      %s13 = ssub.s32 32, 32
      %14 = vsyncadd [#allocation3], %s13
      %s16 = sshll.u32 [#allocation2], 4
      %s17 = int_to_ptr.vmem [resolvable:$true] %s16
      %19 = dma.hbm_to_vmem [thread:$0]  %s0, 32, %s17, [#allocation3]
    $region5: #{tpu_custom_call.1} parent=1 // pred_fallthru
      _
    // Predicated region
    $region6: #{tpu_custom_call.1} parent=1 // pred_check
      _
    $region7: #{tpu_custom_call.1} parent=1 // pred_check_branch
      %21 = sbr.rel (0) target = $region9
    $region8: #{tpu_custom_call.1} parent=1 // pred_region
      _
    $region9: #{tpu_custom_call.1} parent=1 // pred_fallthru
      _
    // Predicated region
    $region10: #{tpu_custom_call.1} parent=1 // pred_check
      _
    $region11: #{tpu_custom_call.1} parent=1 // pred_check_branch
      %23 = sbr.rel (0) target = $region13
    $region12: #{tpu_custom_call.1} parent=1 // pred_region
      _
    $region13: #{tpu_custom_call.1} parent=1 // pred_fallthru
      _
    // Predicated region
    $region14: #{tpu_custom_call.1} parent=1 // pred_check
      _
    $region15: #{tpu_custom_call.1} parent=1 // pred_check_branch
      %25 = sbr.rel (0) target = $region17
    $region16: #{tpu_custom_call.1} parent=1 // pred_region
      %26 = dma.done [#allocation3], 32
    $region17: #{tpu_custom_call.1} parent=1 // pred_fallthru
      _
    %v27 = vld [vmem:[#allocation2] sm:$0x3]
    %v28 = vld [vmem:[%s1] sm:$0x3]
    %v29 = vadd.f32 %v27, %v28
    %v30 = vsub.f32 %v27, %v28
    %vm31 = vcmp.ge.f32.partialorder %v29, 0.0
    %v32 = vld [vmem:[%s2] sm:$0x1]
    %v33 = vld [vmem:[%s2 + $0x1] sm:$0x1]
    %v34 = vlaneseq
    %v35 = vshrl.u32 %v34, 7
    %v36 = vsub.s32 0, %v35
    %v37 = vrot.slane %v32, %v36
    %v38 = vlaneseq
    %v39 = vshrl.u32 %v38, 7
    %v40 = vsub.s32 0, %v39
    %v41 = vrot.slane %v33, %v40
    %v42 = vsel %vm31, %v37, %v41
    %vm43 = vcmp.ge.f32.partialorder %v30, 0.0
    %v44 = vld [vmem:[%s2 + $0x2] sm:$0x1]
    %v45 = vld [vmem:[%s2 + $0x3] sm:$0x1]
    %v46 = vlaneseq
    %v47 = vshrl.u32 %v46, 7
    %v48 = vsub.s32 0, %v47
    %v49 = vrot.slane %v44, %v48
    %v50 = vlaneseq
    %v51 = vshrl.u32 %v50, 7
    %v52 = vsub.s32 0, %v51
    %v53 = vrot.slane %v45, %v52
    %v54 = vsel %vm43, %v49, %v53
    %v55 = vmul.f32 %v42, %v29
    %v56 = vmul.f32 %v54, %v30
    %v57 = vadd.f32 %v55, %v56
    %v58 = vmax.f32 %v57, 0.0
    %59 = vst [vmem:[#allocation5] sm:$0x3] %v58
    // Predicated region
    $region18: #{tpu_custom_call.1} parent=1 // pred_check
      _
    $region19: #{tpu_custom_call.1} parent=1 // pred_check_branch
      %61 = sbr.rel (0) target = $region21
    $region20: #{tpu_custom_call.1} parent=1 // pred_region
      %s63 = ssub.s32 32, 32
      %64 = vsyncadd [#allocation4], %s63
      %s66 = sshll.u32 [#allocation5], 4
      %s67 = int_to_ptr.vmem [resolvable:$true] %s66
      %69 = dma.vmem_to_hbm [thread:$0]  %s67, 32, %s3, [#allocation4]
    $region21: #{tpu_custom_call.1} parent=1 // pred_fallthru
      _
    // Predicated region
    $region22: #{tpu_custom_call.1} parent=1 // pred_check
      _
    $region23: #{tpu_custom_call.1} parent=1 // pred_check_branch
      %71 = sbr.rel (0) target = $region25
    $region24: #{tpu_custom_call.1} parent=1 // pred_region
      %72 = dma.done [#allocation4], 32
    $region25: #{tpu_custom_call.1} parent=1 // pred_fallthru
      _
    %73 = vsyncpa [#allocation3], 1
    %74 = vsyncpa [#allocation4], 1

</llo_original>
